<compile_context>
chip_gen: v6e
topology: v6e:2x2x1
jax: 0.10.0
libtpu: 0.0.40
codegen_flags: <defaults>
</compile_context>

<pallas_src>
import jax
import jax.numpy as jnp
from jax.experimental import pallas as pl
from jax.experimental.pallas import tpu as pltpu

PACK = 8          # original rows packed per lane-dense slab row
TM_PACKED = 1024  # packed rows per grid tile (= 8192 original rows)


def _stats_kernel(xp_ref, wb_ref, psum_ref, psq_ref):
    """Pass 1: z = x_packed @ W_big (no bias); per-tile column sum / sum-of-squares."""
    z = jnp.dot(xp_ref[...], wb_ref[...], preferred_element_type=jnp.float32)
    s = jnp.sum(z, axis=0, keepdims=True)          # (1, PACK*C_out)
    sq = jnp.sum(z * z, axis=0, keepdims=True)
    psum_ref[...] = jnp.broadcast_to(s, psum_ref.shape)
    psq_ref[...] = jnp.broadcast_to(sq, psq_ref.shape)


def _apply_kernel(xp_ref, wb_ref, bp_ref, o_ref):
    """Pass 2: BN-folded matmul + bias + ReLU, full-width (lane-dense) store."""
    y = jnp.dot(xp_ref[...], wb_ref[...], preferred_element_type=jnp.float32)
    o_ref[...] = jnp.maximum(y + bp_ref[...], 0.0).astype(o_ref.dtype)


@jax.jit
def standard_fc2d(x, weight, bias, gamma, beta):
    """x: (B, S, C_in) f32; weight: (C_out, C_in); bias/gamma/beta: (C_out,)."""
    eps = 1e-5
    B, S, C_in = x.shape
    C_out = weight.shape[0]
    N = B * S

    # ----- lane-dense packing: 8 consecutive rows per slab row ----------------
    n_packed = -(-N // PACK)
    tm = min(TM_PACKED, n_packed)
    num_tiles = -(-n_packed // tm)
    n_packed_pad = num_tiles * tm
    n_pad = n_packed_pad * PACK

    x2 = x.reshape(N, C_in).astype(jnp.float32)
    if n_pad > N:
        x2 = jnp.pad(x2, ((0, n_pad - N), (0, 0)))
    xp = x2.reshape(n_packed_pad, PACK * C_in)      # row-major view: free reshape

    Kp = PACK * C_in
    Np = PACK * C_out

    w_t = weight.T.astype(jnp.float32)              # (C_in, C_out)
    eye = jnp.eye(PACK, dtype=jnp.float32)
    w_big = jnp.kron(eye, w_t)                      # (Kp, Np) block-diagonal

    x_spec = pl.BlockSpec((tm, Kp), lambda i: (i, 0))
    w_spec = pl.BlockSpec((Kp, Np), lambda i: (0, 0))     # resident across grid
    b_spec = pl.BlockSpec((1, Np), lambda i: (0, 0))      # resident across grid
    part_spec = pl.BlockSpec((PACK, Np), lambda i: (i, 0))
    o_spec = pl.BlockSpec((tm, Np), lambda i: (i, 0))

    cparams = pltpu.CompilerParams(dimension_semantics=("parallel",))

    # ----- pass 1: streaming per-channel statistics of z = x @ W^T ------------
    psum, psq = pl.pallas_call(
        _stats_kernel,
        grid=(num_tiles,),
        in_specs=[x_spec, w_spec],
        out_specs=(part_spec, part_spec),
        out_shape=(jax.ShapeDtypeStruct((num_tiles * PACK, Np), jnp.float32),
                   jax.ShapeDtypeStruct((num_tiles * PACK, Np), jnp.float32)),
        compiler_params=cparams,
        cost_estimate=pl.CostEstimate(
            flops=2 * n_packed_pad * Kp * Np,
            transcendentals=0,
            bytes_accessed=4 * (n_packed_pad * Kp + Kp * Np
                                + 2 * num_tiles * PACK * Np)),
    )(xp, w_big)

    # tiny reduction of the per-tile partials (padded zero rows contribute 0)
    sum_z = psum.reshape(num_tiles, PACK, Np)[:, 0, :].sum(axis=0)
    sumsq_z = psq.reshape(num_tiles, PACK, Np)[:, 0, :].sum(axis=0)
    sum_z = sum_z.reshape(PACK, C_out).sum(axis=0)          # (C_out,)
    sumsq_z = sumsq_z.reshape(PACK, C_out).sum(axis=0)      # (C_out,)

    inv_n = 1.0 / N                                         # true N, not padded
    mean_z = sum_z * inv_n
    mean_y = mean_z + bias
    # TODO(synk): E[z^2]-E[z]^2 can lose precision for extreme N/activations;
    # switch to a centered second stats pass if tolerances tighten.
    var_y = jnp.maximum(sumsq_z * inv_n - mean_z * mean_z, 0.0)  # biased var
    inv_std = jax.lax.rsqrt(var_y + eps)
    scale = gamma * inv_std                                 # (C_out,)
    shift = beta - mean_y * scale                           # (C_out,)

    # ----- fold BN affine into the linear: relu((x@W^T + b)*scale + shift) ----
    w2_big = jnp.kron(eye, w_t * scale[None, :])            # (Kp, Np)
    b2 = bias * scale + shift                               # (C_out,)
    b2p = jnp.tile(b2, (PACK,)).reshape(1, Np)

    out_p = pl.pallas_call(
        _apply_kernel,
        grid=(num_tiles,),
        in_specs=[x_spec, w_spec, b_spec],
        out_specs=o_spec,
        out_shape=jax.ShapeDtypeStruct((n_packed_pad, Np), jnp.float32),
        compiler_params=cparams,
        cost_estimate=pl.CostEstimate(
            flops=2 * n_packed_pad * Kp * Np,
            transcendentals=0,
            bytes_accessed=4 * (n_packed_pad * Kp + Kp * Np + n_packed_pad * Np)),
    )(xp, w2_big, b2p)

    # (n_packed_pad, 8*C_out) row-major == (n_pad, C_out) row-major
    out = out_p.reshape(n_pad, C_out)[:N]
    return out.reshape(B, S, C_out)


def _reference(x, weight, bias, gamma, beta, eps=1e-5):
    """Pure-JAX reference mirroring the PyTorch forward (training-mode BN)."""
    y = jnp.einsum("bsc,oc->bso", x, weight) + bias          # Linear
    mean = jnp.mean(y, axis=(0, 1), keepdims=True)           # stats over B*S
    var = jnp.mean((y - mean) ** 2, axis=(0, 1), keepdims=True)
    yn = (y - mean) / jnp.sqrt(var + eps) * gamma + beta
    return jnp.maximum(yn, 0.0)                              # ReLU (+ identity dropout)


if __name__ == "__main__":
    # Small shapes consistent with the module: (B, S, C_in) -> (B, S, C_out)
    B, S, C_in, C_out = 2, 8, 32, 16

    key = jax.random.PRNGKey(0)
    kx, kw, kb = jax.random.split(key, 3)

    x = jax.random.normal(kx, (B, S, C_in), dtype=jnp.float32)

    # nn.Linear init: U(-1/sqrt(in_ch), 1/sqrt(in_ch)) for weight and bias.
    bound = 1.0 / (C_in ** 0.5)
    weight = jax.random.uniform(kw, (C_out, C_in), jnp.float32, -bound, bound)
    bias = jax.random.uniform(kb, (C_out,), jnp.float32, -bound, bound)

    # nn.BatchNorm1d init: weight (gamma) = 1, bias (beta) = 0.
    gamma = jnp.ones((C_out,), jnp.float32)
    beta = jnp.zeros((C_out,), jnp.float32)

    out = standard_fc2d(x, weight, bias, gamma, beta)
    out = jax.block_until_ready(out)

    ref = _reference(x, weight, bias, gamma, beta)
    assert out.shape == (B, S, C_out), out.shape
    assert jnp.allclose(out, ref, atol=1e-3, rtol=1e-3), float(jnp.max(jnp.abs(out - ref)))

    print("KERNEL_OK")
</pallas_src>

<mosaic_0001>
module attributes {stable_mosaic.version = 11 : i64} {
  func.func @_stats_kernel(%arg0: i32, %arg1: memref<2x256xf32, #tpu.memory_space<vmem>>, %arg2: memref<256x128xf32, #tpu.memory_space<vmem>>, %arg3: memref<8x128xf32, #tpu.memory_space<vmem>>, %arg4: memref<8x128xf32, #tpu.memory_space<vmem>>) attributes {dimension_semantics = [#tpu.dimension_semantics<parallel>], iteration_bounds = array<i64: 1>, scalar_prefetch = 0 : i64, scratch_operands = 0 : i64, tpu.core_type = #tpu.core_type<tc>, window_params = [{transform_indices = @transform_0, window_bounds = array<i64: 2, 256>}, {pipeline_mode = #tpu.pipeline_mode<synchronous>, transform_indices = @transform_1, window_bounds = array<i64: 256, 128>}, {transform_indices = @transform_2, window_bounds = array<i64: 8, 128>}, {transform_indices = @transform_3, window_bounds = array<i64: 8, 128>}]} {
    %c0 = arith.constant 0 : index
    %c0_0 = arith.constant 0 : index
    %0 = vector.load %arg1[%c0, %c0_0] : memref<2x256xf32, #tpu.memory_space<vmem>>, vector<2x256xf32>
    %c0_1 = arith.constant 0 : index
    %c0_2 = arith.constant 0 : index
    %1 = vector.load %arg2[%c0_1, %c0_2] : memref<256x128xf32, #tpu.memory_space<vmem>>, vector<256x128xf32>
    %cst = arith.constant dense<0.000000e+00> : vector<2x128xf32>
    %2 = tpu.matmul %0, %1, %cst {dimension_numbers = #tpu.dot_dimension_numbers<[1], [0], [0], [1], [0, 0, 1, 1], [], []>} : vector<2x256xf32>, vector<256x128xf32>, vector<2x128xf32> -> vector<2x128xf32>
    %cst_3 = arith.constant dense<0.000000e+00> : vector<128xf32>
    %3 = vector.multi_reduction <add>, %2, %cst_3 [0] : vector<2x128xf32> to vector<128xf32>
    %4 = vector.shape_cast %3 : vector<128xf32> to vector<1x128xf32>
    %5 = arith.mulf %2, %2 : vector<2x128xf32>
    %cst_4 = arith.constant dense<0.000000e+00> : vector<128xf32>
    %6 = vector.multi_reduction <add>, %5, %cst_4 [0] : vector<2x128xf32> to vector<128xf32>
    %7 = vector.shape_cast %6 : vector<128xf32> to vector<1x128xf32>
    %8 = vector.shape_cast %4 : vector<1x128xf32> to vector<1x128xf32>
    %9 = vector.broadcast %8 : vector<1x128xf32> to vector<8x128xf32>
    %c0_5 = arith.constant 0 : index
    %c0_6 = arith.constant 0 : index
    %10 = vector.load %arg3[%c0_5, %c0_6] : memref<8x128xf32, #tpu.memory_space<vmem>>, vector<8x128xf32>
    tpu.vector_store %arg3[%c0_5, %c0_6], %9 {strides = array<i32>} : memref<8x128xf32, #tpu.memory_space<vmem>>, vector<8x128xf32>,
    %11 = vector.shape_cast %7 : vector<1x128xf32> to vector<1x128xf32>
    %12 = vector.broadcast %11 : vector<1x128xf32> to vector<8x128xf32>
    %c0_7 = arith.constant 0 : index
    %c0_8 = arith.constant 0 : index
    %13 = vector.load %arg4[%c0_7, %c0_8] : memref<8x128xf32, #tpu.memory_space<vmem>>, vector<8x128xf32>
    tpu.vector_store %arg4[%c0_7, %c0_8], %12 {strides = array<i32>} : memref<8x128xf32, #tpu.memory_space<vmem>>, vector<8x128xf32>,
    return
  }
  func.func @transform_0(%arg0: i32) -> (i32, i32) {
    %c0_i32 = arith.constant 0 : i32
    %c0_i32_0 = arith.constant 0 : i32
    return %arg0, %c0_i32 : i32, i32
  }
  func.func @transform_1(%arg0: i32) -> (i32, i32) {
    %c0_i32 = arith.constant 0 : i32
    %c0_i32_0 = arith.constant 0 : i32
    %c0_i32_1 = arith.constant 0 : i32
    return %c0_i32, %c0_i32_0 : i32, i32
  }
  func.func @transform_2(%arg0: i32) -> (i32, i32) {
    %c0_i32 = arith.constant 0 : i32
    %c0_i32_0 = arith.constant 0 : i32
    return %arg0, %c0_i32 : i32, i32
  }
  func.func @transform_3(%arg0: i32) -> (i32, i32) {
    %c0_i32 = arith.constant 0 : i32
    %c0_i32_0 = arith.constant 0 : i32
    return %arg0, %c0_i32 : i32, i32
  }
}

module attributes {stable_mosaic.version = 11 : i64} {
  func.func @_apply_kernel(%arg0: i32, %arg1: memref<2x256xf32, #tpu.memory_space<vmem>>, %arg2: memref<256x128xf32, #tpu.memory_space<vmem>>, %arg3: memref<1x128xf32, #tpu.memory_space<vmem>>, %arg4: memref<2x128xf32, #tpu.memory_space<vmem>>) attributes {dimension_semantics = [#tpu.dimension_semantics<parallel>], iteration_bounds = array<i64: 1>, scalar_prefetch = 0 : i64, scratch_operands = 0 : i64, tpu.core_type = #tpu.core_type<tc>, window_params = [{transform_indices = @transform_0, window_bounds = array<i64: 2, 256>}, {pipeline_mode = #tpu.pipeline_mode<synchronous>, transform_indices = @transform_1, window_bounds = array<i64: 256, 128>}, {pipeline_mode = #tpu.pipeline_mode<synchronous>, transform_indices = @transform_2, window_bounds = array<i64: 1, 128>}, {transform_indices = @transform_3, window_bounds = array<i64: 2, 128>}]} {
    %c0 = arith.constant 0 : index
    %c0_0 = arith.constant 0 : index
    %0 = vector.load %arg1[%c0, %c0_0] : memref<2x256xf32, #tpu.memory_space<vmem>>, vector<2x256xf32>
    %c0_1 = arith.constant 0 : index
    %c0_2 = arith.constant 0 : index
    %1 = vector.load %arg2[%c0_1, %c0_2] : memref<256x128xf32, #tpu.memory_space<vmem>>, vector<256x128xf32>
    %cst = arith.constant dense<0.000000e+00> : vector<2x128xf32>
    %2 = tpu.matmul %0, %1, %cst {dimension_numbers = #tpu.dot_dimension_numbers<[1], [0], [0], [1], [0, 0, 1, 1], [], []>} : vector<2x256xf32>, vector<256x128xf32>, vector<2x128xf32> -> vector<2x128xf32>
    %c0_3 = arith.constant 0 : index
    %c0_4 = arith.constant 0 : index
    %3 = vector.load %arg3[%c0_3, %c0_4] : memref<1x128xf32, #tpu.memory_space<vmem>>, vector<1x128xf32>
    %4 = vector.broadcast %3 : vector<1x128xf32> to vector<2x128xf32>
    %5 = arith.addf %2, %4 : vector<2x128xf32>
    %cst_5 = arith.constant 0.000000e+00 : f32
    %6 = vector.broadcast %cst_5 : f32 to vector<2x128xf32>
    %7 = arith.maximumf %5, %6 : vector<2x128xf32>
    %c0_6 = arith.constant 0 : index
    %c0_7 = arith.constant 0 : index
    %8 = vector.load %arg4[%c0_6, %c0_7] : memref<2x128xf32, #tpu.memory_space<vmem>>, vector<2x128xf32>
    tpu.vector_store %arg4[%c0_6, %c0_7], %7 {strides = array<i32>} : memref<2x128xf32, #tpu.memory_space<vmem>>, vector<2x128xf32>,
    return
  }
  func.func @transform_0(%arg0: i32) -> (i32, i32) {
    %c0_i32 = arith.constant 0 : i32
    %c0_i32_0 = arith.constant 0 : i32
    return %arg0, %c0_i32 : i32, i32
  }
  func.func @transform_1(%arg0: i32) -> (i32, i32) {
    %c0_i32 = arith.constant 0 : i32
    %c0_i32_0 = arith.constant 0 : i32
    %c0_i32_1 = arith.constant 0 : i32
    return %c0_i32, %c0_i32_0 : i32, i32
  }
  func.func @transform_2(%arg0: i32) -> (i32, i32) {
    %c0_i32 = arith.constant 0 : i32
    %c0_i32_0 = arith.constant 0 : i32
    %c0_i32_1 = arith.constant 0 : i32
    return %c0_i32, %c0_i32_0 : i32, i32
  }
  func.func @transform_3(%arg0: i32) -> (i32, i32) {
    %c0_i32 = arith.constant 0 : i32
    %c0_i32_0 = arith.constant 0 : i32
    return %arg0, %c0_i32 : i32, i32
  }
}

</mosaic_0001>

<llo_original>
// kernel: tile.8
$region0: #{tile.8}
  #allocation0 [shape = 's32[1]{0}', space=sflag, size = 0x4, scoped, tag = 'scoped memory for tile.8']
  %s0 = inlined_call_operand.vmem [shape: f32[16], index: 0, kind: input, shape index: {}]
  %s1 = inlined_call_operand.vmem [shape: f32[8,16], index: 1, kind: output, shape index: {}]
  // Predicated region
  $region2: #{tile.8} parent=0 // pred_check
    _
  $region3: #{tile.8} parent=0 // pred_check_branch
    %3 = sbr.rel (0) target = $region5
  $region4: #{tile.8} parent=0 // pred_region
    _
  $region5: #{tile.8} parent=0 // pred_fallthru
    _
  %v4 = vld [vmem:[%s0] ss:$0 sm:$0xff]
  %5 = vst [vmem:[%s1] sm:$0xff] %v4

// kernel: tile.9
$region0: #{tile.9}
  %s0 = inlined_call_operand.vmem [shape: f32[8,16], index: 0, kind: input, shape index: {}]
  %s1 = inlined_call_operand.vmem [shape: f32[1,128], index: 1, kind: output, shape index: {}]
  $region1: #{tile.9} parent=0
    #allocation0 [shape = 'u8[4096]{0}', space=vmem, size = 0x1000, scoped, tag = 'scoped mem for output reshape']
    %v2 = vld [vmem:[%s0] sm:$0x1]
    %vm3 = vcmask 130048
    %4 = vst.msk [vmem:[#allocation0] sm:$0x1] %vm3, %v2
    %s5 = scalar_lea.vmem %s0, 7
    %v6 = vld [vmem:[%s5] sm:$0x1]
    %7 = vrot.lane.b32.xlu0 %v6, 112
    %v8 = vpop.permute.xlu0 %7
    %vm9 = vcmask 1048448
    %10 = vst.msk [vmem:[#allocation0] sm:$0x1] %vm9, %v8
    %s11 = scalar_lea.vmem %s0, 6
    %v12 = vld [vmem:[%s11] sm:$0x1]
    %13 = vrot.lane.b32.xlu0 %v12, 96
    %v14 = vpop.permute.xlu0 %13
    %vm15 = vcmask 917248
    %16 = vst.msk [vmem:[#allocation0] sm:$0x1] %vm15, %v14
    %s17 = scalar_lea.vmem %s0, 5
    %v18 = vld [vmem:[%s17] sm:$0x1]
    %19 = vrot.lane.b32.xlu0 %v18, 80
    %v20 = vpop.permute.xlu0 %19
    %vm21 = vcmask 786048
    %22 = vst.msk [vmem:[#allocation0] sm:$0x1] %vm21, %v20
    %s23 = scalar_lea.vmem %s0, 4
    %v24 = vld [vmem:[%s23] sm:$0x1]
    %25 = vrot.lane.b32.xlu0 %v24, 64
    %v26 = vpop.permute.xlu0 %25
    %vm27 = vcmask 654848
    %28 = vst.msk [vmem:[#allocation0] sm:$0x1] %vm27, %v26
    %s29 = scalar_lea.vmem %s0, 3
    %v30 = vld [vmem:[%s29] sm:$0x1]
    %31 = vrot.lane.b32.xlu0 %v30, 48
    %v32 = vpop.permute.xlu0 %31
    %vm33 = vcmask 523648
    %34 = vst.msk [vmem:[#allocation0] sm:$0x1] %vm33, %v32
    %s35 = scalar_lea.vmem %s0, 2
    %v36 = vld [vmem:[%s35] sm:$0x1]
    %37 = vrot.lane.b32.xlu0 %v36, 32
    %v38 = vpop.permute.xlu0 %37
    %vm39 = vcmask 392448
    %40 = vst.msk [vmem:[#allocation0] sm:$0x1] %vm39, %v38
    %s41 = scalar_lea.vmem %s0, 1
    %v42 = vld [vmem:[%s41] sm:$0x1]
    %43 = vrot.lane.b32.xlu0 %v42, 16
    %v44 = vpop.permute.xlu0 %43
    %vm45 = vcmask 261248
    %46 = vst.msk [vmem:[#allocation0] sm:$0x1] %vm45, %v44
    %s48 = sshll.u32 1, 1
    %s49 = ssub.s32 %s48, 1
    %v51 = vld [vmem:[#allocation0] sm:%s49]
    %s52 = sshll.u32 1, 1
    %s53 = ssub.s32 %s52, 1
    %54 = vst [vmem:[%s1] sm:%s53] %v51

// kernel: standard_fc2d.3
$region0: #{standard_fc2d.3}
  #allocation0 [shape = 'u32[]', space=smem, size = 0x4, offset = 0x4, fixed_abs, tag = 'smem constant byte address 0x4 - core index']
  #allocation1 [shape = 'u32[144,128]{1,0:T(1,128)}', space=vmem, size = 0x12000, scoped, tag = 'internal scratch']
  %s0 = inlined_call_operand.vmem [shape: f32[2,256], index: 0, kind: input, shape index: {}]
  %s1 = inlined_call_operand.vmem [shape: f32[256,128], index: 1, kind: input, shape index: {}]
  %s2 = inlined_call_operand.vmem [shape: f32[1,128], index: 2, kind: input, shape index: {}]
  %s3 = inlined_call_operand.vmem [shape: f32[2,128], index: 3, kind: output, shape index: {}]
  %s4 = sld [smem:[#allocation0]]
  $region22: #{standard_fc2d.3} parent=0
    _
  %s6 = ssub.s32 1, %s4
  %s7 = scalar_select 0, %s6, %s4
  // Predicated region
  $region2: #{standard_fc2d.3} parent=0 // pred_check
    _
  $region3: #{standard_fc2d.3} parent=0 // pred_check_branch
    %9 = sbr.rel (0) target = $region5
  $region4: #{standard_fc2d.3} parent=0 // pred_region
    _
  $region5: #{standard_fc2d.3} parent=0 // pred_fallthru
    _
  // Predicated region
  $region6: #{standard_fc2d.3} parent=0 // pred_check
    _
  $region7: #{standard_fc2d.3} parent=0 // pred_check_branch
    %11 = sbr.rel (0) target = $region9
  $region8: #{standard_fc2d.3} parent=0 // pred_region
    _
  $region9: #{standard_fc2d.3} parent=0 // pred_fallthru
    _
  // Predicated region
  $region10: #{standard_fc2d.3} parent=0 // pred_check
    _
  $region11: #{standard_fc2d.3} parent=0 // pred_check_branch
    %13 = sbr.rel (0) target = $region13
  $region12: #{standard_fc2d.3} parent=0 // pred_region
    _
  $region13: #{standard_fc2d.3} parent=0 // pred_fallthru
    _
  %v14 = vld [vmem:[%s0] sm:$0xf]
  %v15 = vld [vmem:[%s1] sm:$0xff]
  %v16 = vld [vmem:[%s1 + $0x8] sm:$0xff]
  %v17 = vld [vmem:[%s1 + $0x10] sm:$0xff]
  %v18 = vld [vmem:[%s1 + $0x18] sm:$0xff]
  %v19 = vld [vmem:[%s1 + $0x20] sm:$0xff]
  %v20 = vld [vmem:[%s1 + $0x28] sm:$0xff]
  %v21 = vld [vmem:[%s1 + $0x30] sm:$0xff]
  %v22 = vld [vmem:[%s1 + $0x38] sm:$0xff]
  %v23 = vld [vmem:[%s1 + $0x40] sm:$0xff]
  %v24 = vld [vmem:[%s1 + $0x48] sm:$0xff]
  %v25 = vld [vmem:[%s1 + $0x50] sm:$0xff]
  %v26 = vld [vmem:[%s1 + $0x58] sm:$0xff]
  %v27 = vld [vmem:[%s1 + $0x60] sm:$0xff]
  %v28 = vld [vmem:[%s1 + $0x68] sm:$0xff]
  %v29 = vld [vmem:[%s1 + $0x70] sm:$0xff]
  %v30 = vld [vmem:[%s1 + $0x78] sm:$0xff]
  %v31 = vld [vmem:[%s1 + $0x80] sm:$0xff]
  %v32 = vld [vmem:[%s1 + $0x88] sm:$0xff]
  %v33 = vld [vmem:[%s1 + $0x90] sm:$0xff]
  %v34 = vld [vmem:[%s1 + $0x98] sm:$0xff]
  %v35 = vld [vmem:[%s1 + $0xa0] sm:$0xff]
  %v36 = vld [vmem:[%s1 + $0xa8] sm:$0xff]
  %v37 = vld [vmem:[%s1 + $0xb0] sm:$0xff]
  %v38 = vld [vmem:[%s1 + $0xb8] sm:$0xff]
  %v39 = vld [vmem:[%s1 + $0xc0] sm:$0xff]
  %v40 = vld [vmem:[%s1 + $0xc8] sm:$0xff]
  %v41 = vld [vmem:[%s1 + $0xd0] sm:$0xff]
  %v42 = vld [vmem:[%s1 + $0xd8] sm:$0xff]
  %v43 = vld [vmem:[%s1 + $0xe0] sm:$0xff]
  %v44 = vld [vmem:[%s1 + $0xe8] sm:$0xff]
  %v45 = vld [vmem:[%s1 + $0xf0] sm:$0xff]
  %v46 = vld [vmem:[%s1 + $0xf8] sm:$0xff]
  %v47 = vld [vmem:[%s2] sm:$0x1]
  %v49 = vlaneseq
  %v50 = vshrl.u32 %v49, 7
  %v51 = vsub.s32 0, %v50
  %v52 = vrot.slane %v47, %v51
  %v56 = vunpack.c.l.s4 1983009808
  %v57 = vunpack.c.0.s8 %v56
  %v58 = vlaneseq
  %v59 = vshrl.u32 %v58, 7
  %v60 = vsub.s32 %v57, %v59
  %v61 = vrot.slane %v14, %v60
  %v62 = vcombine.high %v61, %v61
  %65 = vmatprep.subr.mxu0 0.0
  %66 = vmatpush1.msra.mxu0 %v30
  %67 = vmatprep.subr.mxu0 0.0
  %68 = vmatpush1.msra.mxu0 %v29
  %69 = vmatprep.subr.mxu0 0.0
  %70 = vmatpush1.msra.mxu0 %v28
  %71 = vmatprep.subr.mxu0 0.0
  %72 = vmatpush1.msra.mxu0 %v27
  %73 = vmatprep.subr.mxu0 0.0
  %74 = vmatpush1.msra.mxu0 %v26
  %75 = vmatprep.subr.mxu0 0.0
  %76 = vmatpush1.msra.mxu0 %v25
  %77 = vmatprep.subr.mxu0 0.0
  %78 = vmatpush1.msra.mxu0 %v24
  %79 = vmatprep.subr.mxu0 0.0
  %80 = vmatpush1.msra.mxu0 %v23
  %81 = vmatprep.subr.mxu0 0.0
  %82 = vmatpush1.msra.mxu0 %v22
  %83 = vmatprep.subr.mxu0 0.0
  %84 = vmatpush1.msra.mxu0 %v21
  %85 = vmatprep.subr.mxu0 0.0
  %86 = vmatpush1.msra.mxu0 %v20
  %87 = vmatprep.subr.mxu0 0.0
  %88 = vmatpush1.msra.mxu0 %v19
  %89 = vmatprep.subr.mxu0 0.0
  %90 = vmatpush1.msra.mxu0 %v18
  %91 = vmatprep.subr.mxu0 0.0
  %92 = vmatpush1.msra.mxu0 %v17
  %93 = vmatprep.subr.mxu0 0.0
  %94 = vmatpush1.msra.mxu0 %v16
  %95 = vmatprep.subr.mxu0 0.0
  %96 = vmatpush1.msra.mxu0 %v15
  %97 = vmatprep.subr.mxu0 0.0
  %98 = vmatpush2.msra.mxu0 %v46
  %99 = vmatprep.subr.mxu0 0.0
  %100 = vmatpush2.msra.mxu0 %v45
  %101 = vmatprep.subr.mxu0 0.0
  %102 = vmatpush2.msra.mxu0 %v44
  %103 = vmatprep.subr.mxu0 0.0
  %104 = vmatpush2.msra.mxu0 %v43
  %105 = vmatprep.subr.mxu0 0.0
  %106 = vmatpush2.msra.mxu0 %v42
  %107 = vmatprep.subr.mxu0 0.0
  %108 = vmatpush2.msra.mxu0 %v41
  %109 = vmatprep.subr.mxu0 0.0
  %110 = vmatpush2.msra.mxu0 %v40
  %111 = vmatprep.subr.mxu0 0.0
  %112 = vmatpush2.msra.mxu0 %v39
  %113 = vmatprep.subr.mxu0 0.0
  %114 = vmatpush2.msra.mxu0 %v38
  %115 = vmatprep.subr.mxu0 0.0
  %116 = vmatpush2.msra.mxu0 %v37
  %117 = vmatprep.subr.mxu0 0.0
  %118 = vmatpush2.msra.mxu0 %v36
  %119 = vmatprep.subr.mxu0 0.0
  %120 = vmatpush2.msra.mxu0 %v35
  %121 = vmatprep.subr.mxu0 0.0
  %122 = vmatpush2.msra.mxu0 %v34
  %123 = vmatprep.subr.mxu0 0.0
  %124 = vmatpush2.msra.mxu0 %v33
  %125 = vmatprep.subr.mxu0 0.0
  %126 = vmatpush2.msra.mxu0 %v32
  %127 = vmatprep.subr.mxu0 0.0
  %128 = vmatpush2.msra.mxu0 %v31
  %129 = vmatprep.mubr.f32.mxu0 %v62
  %130 = vmatmul.mubr.f32.gmra.mxu0 %v61
  %v131 = vpop.f32.mrf.mxu0
  %v132 = vadd.f32 %v52, %v131
  %v133 = vpop.f32.mrf.mxu0
  %134 = vdwg.mxu0
  %v135 = vmax.f32 %v132, 0.0
  %136 = vst [vmem:[%s3] sm:$0x3] %v135
  // Predicated region
  $region14: #{standard_fc2d.3} parent=0 // pred_check
    _
  $region15: #{standard_fc2d.3} parent=0 // pred_check_branch
    %138 = sbr.rel (0) target = $region17
  $region16: #{standard_fc2d.3} parent=0 // pred_region
    _
  $region17: #{standard_fc2d.3} parent=0 // pred_fallthru
    _
  // Predicated region
  $region18: #{standard_fc2d.3} parent=0 // pred_check
    _
  $region19: #{standard_fc2d.3} parent=0 // pred_check_branch
    %140 = sbr.rel (0) target = $region21
  $region20: #{standard_fc2d.3} parent=0 // pred_region
    _
  $region21: #{standard_fc2d.3} parent=0 // pred_fallthru
    _

// kernel: standard_fc2d.2
$region0: #{standard_fc2d.2}
  #allocation0 [shape = 'u32[]', space=smem, size = 0x4, offset = 0x4, fixed_abs, tag = 'smem constant byte address 0x4 - core index']
  #allocation1 [shape = 'u32[144,128]{1,0:T(1,128)}', space=vmem, size = 0x12000, scoped, tag = 'internal scratch']
  %s0 = inlined_call_operand.vmem [shape: f32[2,256], index: 0, kind: input, shape index: {}]
  %s1 = inlined_call_operand.vmem [shape: f32[256,128], index: 1, kind: input, shape index: {}]
  %s2 = inlined_call_operand.vmem [shape: f32[8,128], index: 2, kind: output, shape index: {0}]
  %s3 = inlined_call_operand.vmem [shape: f32[8,128], index: 3, kind: output, shape index: {1}]
  %4 = xla_tuple %s2, %s3
  %s5 = sld [smem:[#allocation0]]
  $region26: #{standard_fc2d.2} parent=0
    _
  %s7 = ssub.s32 1, %s5
  %s8 = scalar_select 0, %s7, %s5
  // Predicated region
  $region2: #{standard_fc2d.2} parent=0 // pred_check
    _
  $region3: #{standard_fc2d.2} parent=0 // pred_check_branch
    %10 = sbr.rel (0) target = $region5
  $region4: #{standard_fc2d.2} parent=0 // pred_region
    _
  $region5: #{standard_fc2d.2} parent=0 // pred_fallthru
    _
  // Predicated region
  $region6: #{standard_fc2d.2} parent=0 // pred_check
    _
  $region7: #{standard_fc2d.2} parent=0 // pred_check_branch
    %12 = sbr.rel (0) target = $region9
  $region8: #{standard_fc2d.2} parent=0 // pred_region
    _
  $region9: #{standard_fc2d.2} parent=0 // pred_fallthru
    _
  %v13 = vld [vmem:[%s0] sm:$0xf]
  %v14 = vld [vmem:[%s1] sm:$0xff]
  %v15 = vld [vmem:[%s1 + $0x8] sm:$0xff]
  %v16 = vld [vmem:[%s1 + $0x10] sm:$0xff]
  %v17 = vld [vmem:[%s1 + $0x18] sm:$0xff]
  %v18 = vld [vmem:[%s1 + $0x20] sm:$0xff]
  %v19 = vld [vmem:[%s1 + $0x28] sm:$0xff]
  %v20 = vld [vmem:[%s1 + $0x30] sm:$0xff]
  %v21 = vld [vmem:[%s1 + $0x38] sm:$0xff]
  %v22 = vld [vmem:[%s1 + $0x40] sm:$0xff]
  %v23 = vld [vmem:[%s1 + $0x48] sm:$0xff]
  %v24 = vld [vmem:[%s1 + $0x50] sm:$0xff]
  %v25 = vld [vmem:[%s1 + $0x58] sm:$0xff]
  %v26 = vld [vmem:[%s1 + $0x60] sm:$0xff]
  %v27 = vld [vmem:[%s1 + $0x68] sm:$0xff]
  %v28 = vld [vmem:[%s1 + $0x70] sm:$0xff]
  %v29 = vld [vmem:[%s1 + $0x78] sm:$0xff]
  %v30 = vld [vmem:[%s1 + $0x80] sm:$0xff]
  %v31 = vld [vmem:[%s1 + $0x88] sm:$0xff]
  %v32 = vld [vmem:[%s1 + $0x90] sm:$0xff]
  %v33 = vld [vmem:[%s1 + $0x98] sm:$0xff]
  %v34 = vld [vmem:[%s1 + $0xa0] sm:$0xff]
  %v35 = vld [vmem:[%s1 + $0xa8] sm:$0xff]
  %v36 = vld [vmem:[%s1 + $0xb0] sm:$0xff]
  %v37 = vld [vmem:[%s1 + $0xb8] sm:$0xff]
  %v38 = vld [vmem:[%s1 + $0xc0] sm:$0xff]
  %v39 = vld [vmem:[%s1 + $0xc8] sm:$0xff]
  %v40 = vld [vmem:[%s1 + $0xd0] sm:$0xff]
  %v41 = vld [vmem:[%s1 + $0xd8] sm:$0xff]
  %v42 = vld [vmem:[%s1 + $0xe0] sm:$0xff]
  %v43 = vld [vmem:[%s1 + $0xe8] sm:$0xff]
  %v44 = vld [vmem:[%s1 + $0xf0] sm:$0xff]
  %v45 = vld [vmem:[%s1 + $0xf8] sm:$0xff]
  %v48 = vunpack.c.l.s4 1983009808
  %v49 = vunpack.c.0.s8 %v48
  %v50 = vlaneseq
  %v51 = vshrl.u32 %v50, 7
  %v52 = vsub.s32 %v49, %v51
  %v53 = vrot.slane %v13, %v52
  %v54 = vcombine.high %v53, %v53
  %57 = vmatprep.subr.mxu0 0.0
  %58 = vmatpush1.msra.mxu0 %v29
  %59 = vmatprep.subr.mxu0 0.0
  %60 = vmatpush1.msra.mxu0 %v28
  %61 = vmatprep.subr.mxu0 0.0
  %62 = vmatpush1.msra.mxu0 %v27
  %63 = vmatprep.subr.mxu0 0.0
  %64 = vmatpush1.msra.mxu0 %v26
  %65 = vmatprep.subr.mxu0 0.0
  %66 = vmatpush1.msra.mxu0 %v25
  %67 = vmatprep.subr.mxu0 0.0
  %68 = vmatpush1.msra.mxu0 %v24
  %69 = vmatprep.subr.mxu0 0.0
  %70 = vmatpush1.msra.mxu0 %v23
  %71 = vmatprep.subr.mxu0 0.0
  %72 = vmatpush1.msra.mxu0 %v22
  %73 = vmatprep.subr.mxu0 0.0
  %74 = vmatpush1.msra.mxu0 %v21
  %75 = vmatprep.subr.mxu0 0.0
  %76 = vmatpush1.msra.mxu0 %v20
  %77 = vmatprep.subr.mxu0 0.0
  %78 = vmatpush1.msra.mxu0 %v19
  %79 = vmatprep.subr.mxu0 0.0
  %80 = vmatpush1.msra.mxu0 %v18
  %81 = vmatprep.subr.mxu0 0.0
  %82 = vmatpush1.msra.mxu0 %v17
  %83 = vmatprep.subr.mxu0 0.0
  %84 = vmatpush1.msra.mxu0 %v16
  %85 = vmatprep.subr.mxu0 0.0
  %86 = vmatpush1.msra.mxu0 %v15
  %87 = vmatprep.subr.mxu0 0.0
  %88 = vmatpush1.msra.mxu0 %v14
  %89 = vmatprep.subr.mxu0 0.0
  %90 = vmatpush2.msra.mxu0 %v45
  %91 = vmatprep.subr.mxu0 0.0
  %92 = vmatpush2.msra.mxu0 %v44
  %93 = vmatprep.subr.mxu0 0.0
  %94 = vmatpush2.msra.mxu0 %v43
  %95 = vmatprep.subr.mxu0 0.0
  %96 = vmatpush2.msra.mxu0 %v42
  %97 = vmatprep.subr.mxu0 0.0
  %98 = vmatpush2.msra.mxu0 %v41
  %99 = vmatprep.subr.mxu0 0.0
  %100 = vmatpush2.msra.mxu0 %v40
  %101 = vmatprep.subr.mxu0 0.0
  %102 = vmatpush2.msra.mxu0 %v39
  %103 = vmatprep.subr.mxu0 0.0
  %104 = vmatpush2.msra.mxu0 %v38
  %105 = vmatprep.subr.mxu0 0.0
  %106 = vmatpush2.msra.mxu0 %v37
  %107 = vmatprep.subr.mxu0 0.0
  %108 = vmatpush2.msra.mxu0 %v36
  %109 = vmatprep.subr.mxu0 0.0
  %110 = vmatpush2.msra.mxu0 %v35
  %111 = vmatprep.subr.mxu0 0.0
  %112 = vmatpush2.msra.mxu0 %v34
  %113 = vmatprep.subr.mxu0 0.0
  %114 = vmatpush2.msra.mxu0 %v33
  %115 = vmatprep.subr.mxu0 0.0
  %116 = vmatpush2.msra.mxu0 %v32
  %117 = vmatprep.subr.mxu0 0.0
  %118 = vmatpush2.msra.mxu0 %v31
  %119 = vmatprep.subr.mxu0 0.0
  %120 = vmatpush2.msra.mxu0 %v30
  %121 = vmatprep.mubr.f32.mxu0 %v54
  %122 = vmatmul.mubr.f32.gmra.mxu0 %v53
  %v123 = vpop.f32.mrf.mxu0
  %v124 = vadd.f32 0.0, %v123
  %v125 = vpop.f32.mrf.mxu0
  %126 = vdwg.mxu0
  %vm127 = vcmask 1041408
  %v128 = vsel %vm127, %v124, 0.0
  %v129 = vrot.slane %v128, 4
  %v130 = vadd.f32 %v128, %v129
  %v131 = vrot.slane %v130, 2
  %v132 = vadd.f32 %v130, %v131
  %v133 = vrot.slane %v132, 1
  %v134 = vadd.f32 %v132, %v133
  %v135 = vmul.f32 %v124, %v124
  %v136 = vsel %vm127, %v135, 0.0
  %v137 = vrot.slane %v136, 4
  %v138 = vadd.f32 %v136, %v137
  %v139 = vrot.slane %v138, 2
  %v140 = vadd.f32 %v138, %v139
  %v141 = vrot.slane %v140, 1
  %v142 = vadd.f32 %v140, %v141
  %143 = vst [vmem:[%s2] sm:$0xff] %v134
  %144 = vst [vmem:[%s3] sm:$0xff] %v142
  // Predicated region
  $region10: #{standard_fc2d.2} parent=0 // pred_check
    _
  $region11: #{standard_fc2d.2} parent=0 // pred_check_branch
    %146 = sbr.rel (0) target = $region13
  $region12: #{standard_fc2d.2} parent=0 // pred_region
    _
  $region13: #{standard_fc2d.2} parent=0 // pred_fallthru
    _
  // Predicated region
  $region14: #{standard_fc2d.2} parent=0 // pred_check
    _
  $region15: #{standard_fc2d.2} parent=0 // pred_check_branch
    %148 = sbr.rel (0) target = $region17
  $region16: #{standard_fc2d.2} parent=0 // pred_region
    _
  $region17: #{standard_fc2d.2} parent=0 // pred_fallthru
    _
  // Predicated region
  $region18: #{standard_fc2d.2} parent=0 // pred_check
    _
  $region19: #{standard_fc2d.2} parent=0 // pred_check_branch
    %150 = sbr.rel (0) target = $region21
  $region20: #{standard_fc2d.2} parent=0 // pred_region
    _
  $region21: #{standard_fc2d.2} parent=0 // pred_fallthru
    _
  // Predicated region
  $region22: #{standard_fc2d.2} parent=0 // pred_check
    _
  $region23: #{standard_fc2d.2} parent=0 // pred_check_branch
    %152 = sbr.rel (0) target = $region25
  $region24: #{standard_fc2d.2} parent=0 // pred_region
    _
  $region25: #{standard_fc2d.2} parent=0 // pred_fallthru
    _

</llo_original>
